<compile_context>
chip_gen: v6e
topology: v6e:2x2x1
jax: 0.10.0
libtpu: 0.0.40
codegen_flags: <defaults>
</compile_context>

<pallas_src>
import jax
import jax.numpy as jnp
from jax import lax
from jax.experimental import pallas as pl
from jax.experimental.pallas import tpu as pltpu

_SMOOTH = 1e-05
_DEFAULT_TILE_D = 2048  # lanes per grid step; multiple of 128, fits default scoped VMEM


def _round_up(x, m):
    return ((x + m - 1) // m) * m


def _make_kernel(tile_d, tiles_per_shard, d_actual, d_padded):
    need_mask = d_padded != d_actual

    def kernel(x_ref, t_ref, bce_ref, inter_ref, psum_ref, tsum_ref):
        s = pl.program_id(0)  # shard (parallel)
        j = pl.program_id(1)  # D tile within shard (arbitrary / reduction)

        @pl.when(j == 0)
        def _init():
            bce_ref[...] = jnp.zeros_like(bce_ref)
            inter_ref[...] = jnp.zeros_like(inter_ref)
            psum_ref[...] = jnp.zeros_like(psum_ref)
            tsum_ref[...] = jnp.zeros_like(tsum_ref)

        x = x_ref[...].astype(jnp.float32)
        t = t_ref[...].astype(jnp.float32)

        # Shared transcendental work between BCE-with-logits and sigmoid:
        #   e = exp(-|x|)
        #   bce_elem   = max(x, 0) - x*t + log1p(e)            (stable BCE)
        #   sigmoid(x) = 1/(1+e) if x >= 0 else e/(1+e)
        e = jnp.exp(-jnp.abs(x))
        inv_1pe = 1.0 / (1.0 + e)
        bce_elem = jnp.maximum(x, 0.0) - x * t + jnp.log1p(e)
        p = jnp.where(x >= 0.0, inv_1pe, e * inv_1pe)

        if need_mask:
            base = (s * tiles_per_shard + j) * tile_d
            col = base + lax.broadcasted_iota(jnp.int32, x.shape, 1)
            valid = col < d_actual
            zero = jnp.zeros_like(x)
            bce_elem = jnp.where(valid, bce_elem, zero)
            p = jnp.where(valid, p, zero)
            t = jnp.where(valid, t, zero)

        # Per-row partial sums, kept 2-D (N, 1); accumulate into the resident
        # output blocks (plain VPU adds).
        bce_ref[0] = bce_ref[0] + jnp.sum(bce_elem, axis=1, keepdims=True)
        inter_ref[0] = inter_ref[0] + jnp.sum(p * t, axis=1, keepdims=True)
        psum_ref[0] = psum_ref[0] + jnp.sum(p, axis=1, keepdims=True)
        tsum_ref[0] = tsum_ref[0] + jnp.sum(t, axis=1, keepdims=True)

    return kernel


def bce_dice_loss(logits, target, *, tile_d=_DEFAULT_TILE_D):
    """Pallas TPU implementation of BCEDiceLoss.forward(input, target)."""
    assert logits.shape == target.shape
    n = logits.shape[0]
    # Keep native dtypes; the f32 upcast happens inside the kernel.
    x = logits.reshape(n, -1)
    t = target.reshape(n, -1)
    d = x.shape[1]

    tile_d = min(tile_d, _round_up(d, 128))
    num_tiles = pl.cdiv(d, tile_d)
    num_shards = 2 if num_tiles >= 2 else 1  # megacore split on v7x; harmless elsewhere
    tiles_per_shard = pl.cdiv(num_tiles, num_shards)
    d_padded = num_shards * tiles_per_shard * tile_d

    if d_padded != d:
        x = jnp.pad(x, ((0, 0), (0, d_padded - d)))
        t = jnp.pad(t, ((0, 0), (0, d_padded - d)))

    in_spec = pl.BlockSpec((n, tile_d), lambda s, j: (0, s * tiles_per_shard + j))
    part_shape = jax.ShapeDtypeStruct((num_shards, n, 1), jnp.float32)
    part_spec = pl.BlockSpec((1, n, 1), lambda s, j: (s, 0, 0))

    bytes_accessed = (n * d_padded * (x.dtype.itemsize + t.dtype.itemsize)
                      + 4 * num_shards * n * 4)
    cost = pl.CostEstimate(
        flops=10 * n * d_padded,
        transcendentals=3 * n * d_padded,
        bytes_accessed=bytes_accessed,
    )

    bce_rows, inter_rows, psum_rows, tsum_rows = pl.pallas_call(
        _make_kernel(tile_d, tiles_per_shard, d, d_padded),
        grid=(num_shards, tiles_per_shard),
        in_specs=[in_spec, in_spec],
        out_specs=[part_spec, part_spec, part_spec, part_spec],
        out_shape=[part_shape, part_shape, part_shape, part_shape],
        compiler_params=pltpu.CompilerParams(
            dimension_semantics=("parallel", "arbitrary")),
        cost_estimate=cost,
    )(x, t)

    # Tiny final combine in plain JAX (O(N) work).
    bce = jnp.sum(bce_rows) / jnp.float32(n * d)
    inter = jnp.sum(inter_rows, axis=(0, 2))
    psum = jnp.sum(psum_rows, axis=(0, 2))
    tsum = jnp.sum(tsum_rows, axis=(0, 2))
    dice = (2.0 * inter + _SMOOTH) / (psum + tsum + _SMOOTH)
    dice_loss = 1.0 - jnp.sum(dice) / jnp.float32(n)
    return 0.5 * bce + dice_loss


def _reference_bce_dice_loss(logits, target):
    """Pure-JAX reference mirroring the PyTorch module."""
    n = logits.shape[0]
    x = logits.astype(jnp.float32)
    t = target.astype(jnp.float32)
    bce = jnp.mean(jnp.maximum(x, 0.0) - x * t + jnp.log1p(jnp.exp(-jnp.abs(x))))
    p = jax.nn.sigmoid(x).reshape(n, -1)
    tf = t.reshape(n, -1)
    inter = jnp.sum(p * tf, axis=1)
    dice = (2.0 * inter + _SMOOTH) / (jnp.sum(p, axis=1) + jnp.sum(tf, axis=1) + _SMOOTH)
    return 0.5 * bce + (1.0 - jnp.sum(dice) / n)


if __name__ == "__main__":
    key = jax.random.PRNGKey(0)

    # Primary small shape consistent with a segmentation loss: (N, C, H, W).
    k1, k2 = jax.random.split(key)
    N, C, H, W = 2, 4, 16, 16
    logits = jax.random.normal(k1, (N, C, H, W), dtype=jnp.float32)
    target = (jax.random.uniform(k2, (N, C, H, W)) > 0.5).astype(jnp.float32)

    loss = bce_dice_loss(logits, target)
    loss = jax.block_until_ready(loss)
    ref = _reference_bce_dice_loss(logits, target)
    assert jnp.allclose(loss, ref, rtol=1e-5, atol=1e-5), (loss, ref)

    # Second small check exercising the tiled / sharded / masked path
    # (D = 5120 -> 3 tiles of 2048, 2 shards, padded+masked tail).
    k3, k4 = jax.random.split(k2)
    logits2 = jax.random.normal(k3, (2, 4, 40, 32), dtype=jnp.float32)
    target2 = (jax.random.uniform(k4, (2, 4, 40, 32)) > 0.5).astype(jnp.float32)

    loss2 = bce_dice_loss(logits2, target2)
    loss2 = jax.block_until_ready(loss2)
    ref2 = _reference_bce_dice_loss(logits2, target2)
    assert jnp.allclose(loss2, ref2, rtol=1e-5, atol=1e-5), (loss2, ref2)

    print("KERNEL_OK")
</pallas_src>

<mosaic_0001>
module attributes {stable_mosaic.version = 11 : i64} {
  func.func @kernel(%arg0: i32, %arg1: i32, %arg2: memref<2x1024xf32, #tpu.memory_space<vmem>>, %arg3: memref<2x1024xf32, #tpu.memory_space<vmem>>, %arg4: memref<1x2x1xf32, #tpu.memory_space<vmem>>, %arg5: memref<1x2x1xf32, #tpu.memory_space<vmem>>, %arg6: memref<1x2x1xf32, #tpu.memory_space<vmem>>, %arg7: memref<1x2x1xf32, #tpu.memory_space<vmem>>) attributes {dimension_semantics = [#tpu.dimension_semantics<parallel>, #tpu.dimension_semantics<arbitrary>], iteration_bounds = array<i64: 1, 1>, scalar_prefetch = 0 : i64, scratch_operands = 0 : i64, tpu.core_type = #tpu.core_type<tc>, window_params = [{transform_indices = @transform_0, window_bounds = array<i64: 2, 1024>}, {transform_indices = @transform_1, window_bounds = array<i64: 2, 1024>}, {transform_indices = @transform_2, window_bounds = array<i64: 1, 2, 1>}, {transform_indices = @transform_3, window_bounds = array<i64: 1, 2, 1>}, {transform_indices = @transform_4, window_bounds = array<i64: 1, 2, 1>}, {transform_indices = @transform_5, window_bounds = array<i64: 1, 2, 1>}]} {
    %c0_i32 = arith.constant 0 : i32
    %0 = arith.cmpi eq, %arg1, %c0_i32 : i32
    %1 = arith.extui %0 : i1 to i32
    %c0_i32_0 = arith.constant 0 : i32
    %2 = arith.cmpi ne, %1, %c0_i32_0 : i32
    scf.if %2 {
      %cst_36 = arith.constant 0.000000e+00 : f32
      %56 = vector.broadcast %cst_36 : f32 to vector<1x2x1xf32>
      %c0_37 = arith.constant 0 : index
      %c0_38 = arith.constant 0 : index
      %c0_39 = arith.constant 0 : index
      %57 = vector.load %arg4[%c0_37, %c0_38, %c0_39] : memref<1x2x1xf32, #tpu.memory_space<vmem>>, vector<1x2x1xf32>
      tpu.vector_store %arg4[%c0_37, %c0_38, %c0_39], %56 {strides = array<i32>} : memref<1x2x1xf32, #tpu.memory_space<vmem>>, vector<1x2x1xf32>,
      %cst_40 = arith.constant 0.000000e+00 : f32
      %58 = vector.broadcast %cst_40 : f32 to vector<1x2x1xf32>
      %c0_41 = arith.constant 0 : index
      %c0_42 = arith.constant 0 : index
      %c0_43 = arith.constant 0 : index
      %59 = vector.load %arg5[%c0_41, %c0_42, %c0_43] : memref<1x2x1xf32, #tpu.memory_space<vmem>>, vector<1x2x1xf32>
      tpu.vector_store %arg5[%c0_41, %c0_42, %c0_43], %58 {strides = array<i32>} : memref<1x2x1xf32, #tpu.memory_space<vmem>>, vector<1x2x1xf32>,
      %cst_44 = arith.constant 0.000000e+00 : f32
      %60 = vector.broadcast %cst_44 : f32 to vector<1x2x1xf32>
      %c0_45 = arith.constant 0 : index
      %c0_46 = arith.constant 0 : index
      %c0_47 = arith.constant 0 : index
      %61 = vector.load %arg6[%c0_45, %c0_46, %c0_47] : memref<1x2x1xf32, #tpu.memory_space<vmem>>, vector<1x2x1xf32>
      tpu.vector_store %arg6[%c0_45, %c0_46, %c0_47], %60 {strides = array<i32>} : memref<1x2x1xf32, #tpu.memory_space<vmem>>, vector<1x2x1xf32>,
      %cst_48 = arith.constant 0.000000e+00 : f32
      %62 = vector.broadcast %cst_48 : f32 to vector<1x2x1xf32>
      %c0_49 = arith.constant 0 : index
      %c0_50 = arith.constant 0 : index
      %c0_51 = arith.constant 0 : index
      %63 = vector.load %arg7[%c0_49, %c0_50, %c0_51] : memref<1x2x1xf32, #tpu.memory_space<vmem>>, vector<1x2x1xf32>
      tpu.vector_store %arg7[%c0_49, %c0_50, %c0_51], %62 {strides = array<i32>} : memref<1x2x1xf32, #tpu.memory_space<vmem>>, vector<1x2x1xf32>,
    } else {
    }
    %c0 = arith.constant 0 : index
    %c0_1 = arith.constant 0 : index
    %3 = vector.load %arg2[%c0, %c0_1] : memref<2x1024xf32, #tpu.memory_space<vmem>>, vector<2x1024xf32>
    %c0_2 = arith.constant 0 : index
    %c0_3 = arith.constant 0 : index
    %4 = vector.load %arg3[%c0_2, %c0_3] : memref<2x1024xf32, #tpu.memory_space<vmem>>, vector<2x1024xf32>
    %5 = math.absf %3 : vector<2x1024xf32>
    %cst = arith.constant 0.000000e+00 : f32
    %6 = vector.broadcast %cst : f32 to vector<2x1024xf32>
    %7 = arith.subf %6, %5 : vector<2x1024xf32>
    %8 = math.exp %7 : vector<2x1024xf32>
    %cst_4 = arith.constant 1.000000e+00 : f32
    %9 = vector.broadcast %cst_4 : f32 to vector<2x1024xf32>
    %10 = arith.addf %9, %8 : vector<2x1024xf32>
    %cst_5 = arith.constant 1.000000e+00 : f32
    %11 = vector.broadcast %cst_5 : f32 to vector<2x1024xf32>
    %12 = arith.divf %11, %10 : vector<2x1024xf32>
    %cst_6 = arith.constant 0.000000e+00 : f32
    %13 = vector.broadcast %cst_6 : f32 to vector<2x1024xf32>
    %14 = arith.maximumf %3, %13 : vector<2x1024xf32>
    %15 = arith.mulf %3, %4 : vector<2x1024xf32>
    %16 = arith.subf %14, %15 : vector<2x1024xf32>
    %17 = math.log1p %8 : vector<2x1024xf32>
    %18 = arith.addf %16, %17 : vector<2x1024xf32>
    %cst_7 = arith.constant 0.000000e+00 : f32
    %19 = vector.broadcast %cst_7 : f32 to vector<2x1024xf32>
    %20 = arith.cmpf oge, %3, %19 : vector<2x1024xf32>
    %21 = arith.mulf %8, %12 : vector<2x1024xf32>
    %22 = arith.select %20, %12, %21 : vector<2x1024xi1>, vector<2x1024xf32>
    %c0_8 = arith.constant 0 : index
    %c0_9 = arith.constant 0 : index
    %c0_10 = arith.constant 0 : index
    %23 = vector.load %arg4[%c0_8, %c0_9, %c0_10] : memref<1x2x1xf32, #tpu.memory_space<vmem>>, vector<1x2x1xf32>
    %24 = vector.shape_cast %23 : vector<1x2x1xf32> to vector<2x1xf32>
    %cst_11 = arith.constant dense<0.000000e+00> : vector<2xf32>
    %25 = vector.multi_reduction <add>, %18, %cst_11 [1] : vector<2x1024xf32> to vector<2xf32>
    %26 = vector.shape_cast %25 : vector<2xf32> to vector<2x1xf32>
    %27 = arith.addf %24, %26 : vector<2x1xf32>
    %c0_12 = arith.constant 0 : index
    %c0_13 = arith.constant 0 : index
    %c0_14 = arith.constant 0 : index
    %28 = vector.load %arg4[%c0_12, %c0_13, %c0_14] : memref<1x2x1xf32, #tpu.memory_space<vmem>>, vector<1x2x1xf32>
    %29 = vector.shape_cast %28 : vector<1x2x1xf32> to vector<2x1xf32>
    %30 = vector.shape_cast %27 : vector<2x1xf32> to vector<1x2x1xf32>
    tpu.vector_store %arg4[%c0_12, %c0_13, %c0_14], %30 {strides = array<i32>} : memref<1x2x1xf32, #tpu.memory_space<vmem>>, vector<1x2x1xf32>,
    %c0_15 = arith.constant 0 : index
    %c0_16 = arith.constant 0 : index
    %c0_17 = arith.constant 0 : index
    %31 = vector.load %arg5[%c0_15, %c0_16, %c0_17] : memref<1x2x1xf32, #tpu.memory_space<vmem>>, vector<1x2x1xf32>
    %32 = vector.shape_cast %31 : vector<1x2x1xf32> to vector<2x1xf32>
    %33 = arith.mulf %22, %4 : vector<2x1024xf32>
    %cst_18 = arith.constant dense<0.000000e+00> : vector<2xf32>
    %34 = vector.multi_reduction <add>, %33, %cst_18 [1] : vector<2x1024xf32> to vector<2xf32>
    %35 = vector.shape_cast %34 : vector<2xf32> to vector<2x1xf32>
    %36 = arith.addf %32, %35 : vector<2x1xf32>
    %c0_19 = arith.constant 0 : index
    %c0_20 = arith.constant 0 : index
    %c0_21 = arith.constant 0 : index
    %37 = vector.load %arg5[%c0_19, %c0_20, %c0_21] : memref<1x2x1xf32, #tpu.memory_space<vmem>>, vector<1x2x1xf32>
    %38 = vector.shape_cast %37 : vector<1x2x1xf32> to vector<2x1xf32>
    %39 = vector.shape_cast %36 : vector<2x1xf32> to vector<1x2x1xf32>
    tpu.vector_store %arg5[%c0_19, %c0_20, %c0_21], %39 {strides = array<i32>} : memref<1x2x1xf32, #tpu.memory_space<vmem>>, vector<1x2x1xf32>,
    %c0_22 = arith.constant 0 : index
    %c0_23 = arith.constant 0 : index
    %c0_24 = arith.constant 0 : index
    %40 = vector.load %arg6[%c0_22, %c0_23, %c0_24] : memref<1x2x1xf32, #tpu.memory_space<vmem>>, vector<1x2x1xf32>
    %41 = vector.shape_cast %40 : vector<1x2x1xf32> to vector<2x1xf32>
    %cst_25 = arith.constant dense<0.000000e+00> : vector<2xf32>
    %42 = vector.multi_reduction <add>, %22, %cst_25 [1] : vector<2x1024xf32> to vector<2xf32>
    %43 = vector.shape_cast %42 : vector<2xf32> to vector<2x1xf32>
    %44 = arith.addf %41, %43 : vector<2x1xf32>
    %c0_26 = arith.constant 0 : index
    %c0_27 = arith.constant 0 : index
    %c0_28 = arith.constant 0 : index
    %45 = vector.load %arg6[%c0_26, %c0_27, %c0_28] : memref<1x2x1xf32, #tpu.memory_space<vmem>>, vector<1x2x1xf32>
    %46 = vector.shape_cast %45 : vector<1x2x1xf32> to vector<2x1xf32>
    %47 = vector.shape_cast %44 : vector<2x1xf32> to vector<1x2x1xf32>
    tpu.vector_store %arg6[%c0_26, %c0_27, %c0_28], %47 {strides = array<i32>} : memref<1x2x1xf32, #tpu.memory_space<vmem>>, vector<1x2x1xf32>,
    %c0_29 = arith.constant 0 : index
    %c0_30 = arith.constant 0 : index
    %c0_31 = arith.constant 0 : index
    %48 = vector.load %arg7[%c0_29, %c0_30, %c0_31] : memref<1x2x1xf32, #tpu.memory_space<vmem>>, vector<1x2x1xf32>
    %49 = vector.shape_cast %48 : vector<1x2x1xf32> to vector<2x1xf32>
    %cst_32 = arith.constant dense<0.000000e+00> : vector<2xf32>
    %50 = vector.multi_reduction <add>, %4, %cst_32 [1] : vector<2x1024xf32> to vector<2xf32>
    %51 = vector.shape_cast %50 : vector<2xf32> to vector<2x1xf32>
    %52 = arith.addf %49, %51 : vector<2x1xf32>
    %c0_33 = arith.constant 0 : index
    %c0_34 = arith.constant 0 : index
    %c0_35 = arith.constant 0 : index
    %53 = vector.load %arg7[%c0_33, %c0_34, %c0_35] : memref<1x2x1xf32, #tpu.memory_space<vmem>>, vector<1x2x1xf32>
    %54 = vector.shape_cast %53 : vector<1x2x1xf32> to vector<2x1xf32>
    %55 = vector.shape_cast %52 : vector<2x1xf32> to vector<1x2x1xf32>
    tpu.vector_store %arg7[%c0_33, %c0_34, %c0_35], %55 {strides = array<i32>} : memref<1x2x1xf32, #tpu.memory_space<vmem>>, vector<1x2x1xf32>,
    return
  }
  func.func @transform_0(%arg0: i32, %arg1: i32) -> (i32, i32) {
    %c1_i32 = arith.constant 1 : i32
    %0 = arith.muli %arg0, %c1_i32 : i32
    %1 = arith.addi %0, %arg1 : i32
    %c0_i32 = arith.constant 0 : i32
    %c0_i32_0 = arith.constant 0 : i32
    return %c0_i32, %1 : i32, i32
  }
  func.func @transform_1(%arg0: i32, %arg1: i32) -> (i32, i32) {
    %c1_i32 = arith.constant 1 : i32
    %0 = arith.muli %arg0, %c1_i32 : i32
    %1 = arith.addi %0, %arg1 : i32
    %c0_i32 = arith.constant 0 : i32
    %c0_i32_0 = arith.constant 0 : i32
    return %c0_i32, %1 : i32, i32
  }
  func.func @transform_2(%arg0: i32, %arg1: i32) -> (i32, i32, i32) {
    %c0_i32 = arith.constant 0 : i32
    %c0_i32_0 = arith.constant 0 : i32
    %c0_i32_1 = arith.constant 0 : i32
    return %arg0, %c0_i32, %c0_i32_0 : i32, i32, i32
  }
  func.func @transform_3(%arg0: i32, %arg1: i32) -> (i32, i32, i32) {
    %c0_i32 = arith.constant 0 : i32
    %c0_i32_0 = arith.constant 0 : i32
    %c0_i32_1 = arith.constant 0 : i32
    return %arg0, %c0_i32, %c0_i32_0 : i32, i32, i32
  }
  func.func @transform_4(%arg0: i32, %arg1: i32) -> (i32, i32, i32) {
    %c0_i32 = arith.constant 0 : i32
    %c0_i32_0 = arith.constant 0 : i32
    %c0_i32_1 = arith.constant 0 : i32
    return %arg0, %c0_i32, %c0_i32_0 : i32, i32, i32
  }
  func.func @transform_5(%arg0: i32, %arg1: i32) -> (i32, i32, i32) {
    %c0_i32 = arith.constant 0 : i32
    %c0_i32_0 = arith.constant 0 : i32
    %c0_i32_1 = arith.constant 0 : i32
    return %arg0, %c0_i32, %c0_i32_0 : i32, i32, i32
  }
}

</mosaic_0001>

<llo_original>
// kernel: tpu_custom_call.1
$region0: #{tpu_custom_call.1}
  #allocation0 [shape = 'u32[]', space=smem, size = 0x4, offset = 0x4, fixed_abs, tag = 'smem constant byte address 0x4 - core index']
  #allocation1 [shape = 'u32[144,128]{1,0:T(1,128)}', space=vmem, size = 0x12000, scoped, tag = 'internal scratch']
  %s0 = inlined_call_operand.hbm [shape: f32[2,1024], index: 0, kind: input, shape index: {}]
  %s1 = inlined_call_operand.hbm [shape: f32[2,1024], index: 1, kind: input, shape index: {}]
  %s2 = inlined_call_operand.vmem [shape: f32[1,2,1], index: 2, kind: output, shape index: {0}]
  %s3 = inlined_call_operand.vmem [shape: f32[1,2,1], index: 3, kind: output, shape index: {1}]
  %s4 = inlined_call_operand.vmem [shape: f32[1,2,1], index: 4, kind: output, shape index: {2}]
  %s5 = inlined_call_operand.vmem [shape: f32[1,2,1], index: 5, kind: output, shape index: {3}]
  %6 = xla_tuple %s2, %s3, %s4, %s5
  %s7 = sld [smem:[#allocation0]]
  $region54: #{tpu_custom_call.1} parent=0
    _
  %s9 = ssub.s32 1, %s7
  %s10 = scalar_select 0, %s9, %s7
  $region1: #{tpu_custom_call.1} parent=0
    #allocation2 [shape = 'u8[8192]{0}', space=vmem, size = 0x2000, scoped, tag = 'input window, operand 0, single buffered']
    #allocation3 [shape = 's32[1]{0}', space=sflag, size = 0x4, scoped, tag = 'scoped memory for tpu_custom_call.1']
    #allocation4 [shape = 'u8[8192]{0}', space=vmem, size = 0x2000, scoped, tag = 'input window, operand 1, single buffered']
    #allocation5 [shape = 's32[1]{0}', space=sflag, size = 0x4, scoped, tag = 'scoped memory for tpu_custom_call.1']
    %11 = vsyncpa [#allocation3], 0
    %12 = vsyncpa [#allocation5], 0
    // Predicated region
    $region2: #{tpu_custom_call.1} parent=1 // pred_check
      _
    $region3: #{tpu_custom_call.1} parent=1 // pred_check_branch
      %14 = sbr.rel (0) target = $region5
    $region4: #{tpu_custom_call.1} parent=1 // pred_region
      %s15 = sadd.s32 0, 0
      %s16 = smul.u32 8, %s15
      %s18 = ssub.s32 256, 256
      %19 = vsyncadd [#allocation3], %s18
      %s20 = smul.addr %s16, 32
      %s21 = scalar_lea.hbm %s0, %s20
      %s23 = sshll.u32 [#allocation2], 4
      %s24 = int_to_ptr.vmem [resolvable:$true] %s23
      %26 = dma.hbm_to_vmem [thread:$0]  %s21, 256, %s24, [#allocation3]
    $region5: #{tpu_custom_call.1} parent=1 // pred_fallthru
      _
    // Predicated region
    $region6: #{tpu_custom_call.1} parent=1 // pred_check
      _
    $region7: #{tpu_custom_call.1} parent=1 // pred_check_branch
      %28 = sbr.rel (0) target = $region9
    $region8: #{tpu_custom_call.1} parent=1 // pred_region
      %s29 = sadd.s32 0, 0
      %s30 = smul.u32 8, %s29
      %s32 = ssub.s32 256, 256
      %33 = vsyncadd [#allocation5], %s32
      %s34 = smul.addr %s30, 32
      %s35 = scalar_lea.hbm %s1, %s34
      %s37 = sshll.u32 [#allocation4], 4
      %s38 = int_to_ptr.vmem [resolvable:$true] %s37
      %40 = dma.hbm_to_vmem [thread:$0]  %s35, 256, %s38, [#allocation5]
    $region9: #{tpu_custom_call.1} parent=1 // pred_fallthru
      _
    // Predicated region
    $region10: #{tpu_custom_call.1} parent=1 // pred_check
      _
    $region11: #{tpu_custom_call.1} parent=1 // pred_check_branch
      %42 = sbr.rel (0) target = $region13
    $region12: #{tpu_custom_call.1} parent=1 // pred_region
      %43 = dma.done [#allocation3], 256
    $region13: #{tpu_custom_call.1} parent=1 // pred_fallthru
      _
    // Predicated region
    $region14: #{tpu_custom_call.1} parent=1 // pred_check
      _
    $region15: #{tpu_custom_call.1} parent=1 // pred_check_branch
      %45 = sbr.rel (0) target = $region17
    $region16: #{tpu_custom_call.1} parent=1 // pred_region
      %46 = dma.done [#allocation5], 256
    $region17: #{tpu_custom_call.1} parent=1 // pred_fallthru
      _
    %s47 = sadd.s32 0, 0
    %s48 = smul.u32 8, %s47
    %s49 = sadd.s32 0, 0
    %s50 = smul.u32 8, %s49
    %p51 = scmp.eq.s32.totalorder 0, 0
    // Predicated region
    $region18: #{tpu_custom_call.1} parent=1 // pred_check
      %p52 = pneg %p51
    $region19: #{tpu_custom_call.1} parent=1 // pred_check_branch
      %54 = sbr.rel (%p52) target = $region21
    $region20: #{tpu_custom_call.1} parent=1 // pred_region
      %vm55 = vcmask 1024
      %56 = vst.msk [vmem:[%s2] sm:$0x3] %vm55, 0.0
      %57 = vst.msk [vmem:[%s3] sm:$0x3] %vm55, 0.0
      %58 = vst.msk [vmem:[%s4] sm:$0x3] %vm55, 0.0
      %59 = vst.msk [vmem:[%s5] sm:$0x3] %vm55, 0.0
    $region21: #{tpu_custom_call.1} parent=1 // pred_fallthru
      _
    %v60 = vld [vmem:[#allocation2] sm:$0xff]
    %v61 = vld [vmem:[#allocation2 + $0x8] sm:$0xff]
    %v62 = vld [vmem:[#allocation4] sm:$0xff]
    %v63 = vld [vmem:[#allocation4 + $0x8] sm:$0xff]
    %v64 = vand.u32 2147483647, %v60
    %v65 = vand.u32 2147483647, %v61
    %v66 = vsub.f32 0.0, %v64
    %v67 = vsub.f32 0.0, %v65
    %v68 = vmul.f32 %v66, 1.442695
    %v69 = vpow.pop %v68
    %v70 = vmul.f32 %v67, 1.442695
    %v71 = vpow.pop %v70
    %v72 = vadd.f32 %v69, 1.0
    %v73 = vadd.f32 %v71, 1.0
    %v74 = vrcp.pop %v72
    %v75 = vmul.f32 1.0, %v74
    %v76 = vrcp.pop %v73
    %v77 = vmul.f32 1.0, %v76
    %v78 = vmax.f32 %v60, 0.0
    %v79 = vmax.f32 %v61, 0.0
    %v80 = vmul.f32 %v60, %v62
    %v81 = vmul.f32 %v61, %v63
    %v82 = vsub.f32 %v78, %v80
    %v83 = vsub.f32 %v79, %v81
    %v84 = vadd.f32 %v69, 1.0
    %v85 = vlog2.pop %v84
    %v86 = vmul.f32 %v85, 0.6931472
    %v87 = vmul.f32 -0.5, %v69
    %v88 = vadd.f32 %v87, 1.0
    %v89 = vmul.f32 %v88, %v69
    %v90 = vand.u32 2147483647, %v69
    %vm91 = vcmp.lt.f32.partialorder %v90, 0.0004427343
    %v92 = vsel %vm91, %v89, %v86
    %v93 = vadd.f32 %v71, 1.0
    %v94 = vlog2.pop %v93
    %v95 = vmul.f32 %v94, 0.6931472
    %v96 = vmul.f32 -0.5, %v71
    %v97 = vadd.f32 %v96, 1.0
    %v98 = vmul.f32 %v97, %v71
    %v99 = vand.u32 2147483647, %v71
    %vm100 = vcmp.lt.f32.partialorder %v99, 0.0004427343
    %v101 = vsel %vm100, %v98, %v95
    %v102 = vadd.f32 %v82, %v92
    %v103 = vadd.f32 %v83, %v101
    %vm104 = vcmp.ge.f32.partialorder %v60, 0.0
    %vm105 = vcmp.ge.f32.partialorder %v61, 0.0
    %v106 = vmul.f32 %v69, %v75
    %v107 = vmul.f32 %v71, %v77
    %v108 = vsel %vm104, %v75, %v106
    %v109 = vsel %vm105, %v77, %v107
    %v110 = vld [vmem:[%s2] sm:$0x3]
    %v113 = vcombine.high %v102, %v102
    %v115 = vunpack.c.l.s4 1983009808
    %v116 = vunpack.c.0.s8 %v115
    %v117 = vlaneseq
    %v118 = vshrl.u32 %v117, 7
    %v119 = vsub.s32 %v116, %v118
    %v120 = vrot.slane %v102, %v119
    %v122 = vunpack.c.l.s4 1983009808
    %v123 = vunpack.c.0.s8 %v122
    %v124 = vlaneseq
    %v125 = vshrl.u32 %v124, 7
    %v126 = vsub.s32 %v123, %v125
    %v127 = vrot.slane %v113, %v126
    %v128 = vcombine.high %v120, %v120
    %v129 = vcombine.high %v127, %v127
    %v130 = vcombine.high %v103, %v103
    %v132 = vunpack.c.l.s4 1983009808
    %v133 = vunpack.c.0.s8 %v132
    %v134 = vlaneseq
    %v135 = vshrl.u32 %v134, 7
    %v136 = vsub.s32 %v133, %v135
    %v137 = vrot.slane %v103, %v136
    %v139 = vunpack.c.l.s4 1983009808
    %v140 = vunpack.c.0.s8 %v139
    %v141 = vlaneseq
    %v142 = vshrl.u32 %v141, 7
    %v143 = vsub.s32 %v140, %v142
    %v144 = vrot.slane %v130, %v143
    %v145 = vcombine.high %v137, %v137
    %v146 = vcombine.high %v144, %v144
    %vm155 = vcmask 1041408
    %v156 = vsel %vm155, %v120, 0.0
    %v157 = vsel %vm155, %v128, 0.0
    %v158 = vadd.f32 %v156, %v157
    %v159 = vsel %vm155, %v127, 0.0
    %v160 = vadd.f32 %v158, %v159
    %v161 = vsel %vm155, %v129, 0.0
    %v162 = vadd.f32 %v160, %v161
    %v163 = vsel %vm155, %v137, 0.0
    %v164 = vadd.f32 %v162, %v163
    %v165 = vsel %vm155, %v145, 0.0
    %v166 = vadd.f32 %v164, %v165
    %v167 = vsel %vm155, %v144, 0.0
    %v168 = vadd.f32 %v166, %v167
    %v169 = vsel %vm155, %v146, 0.0
    %v170 = vadd.f32 %v168, %v169
    %171 = vadd.xlane.f32.xlu0 %v170
    %v172 = vpop.xlane.xlu0 %171
    %v173 = vadd.f32 %v110, %v172
    %vm174 = vcmask 1024
    %175 = vst.msk [vmem:[%s2] sm:$0x3] %vm174, %v173
    %v176 = vld [vmem:[%s3] sm:$0x3]
    %v177 = vmul.f32 %v108, %v62
    %v178 = vmul.f32 %v109, %v63
    %v181 = vcombine.high %v177, %v177
    %v183 = vunpack.c.l.s4 1983009808
    %v184 = vunpack.c.0.s8 %v183
    %v185 = vlaneseq
    %v186 = vshrl.u32 %v185, 7
    %v187 = vsub.s32 %v184, %v186
    %v188 = vrot.slane %v177, %v187
    %v190 = vunpack.c.l.s4 1983009808
    %v191 = vunpack.c.0.s8 %v190
    %v192 = vlaneseq
    %v193 = vshrl.u32 %v192, 7
    %v194 = vsub.s32 %v191, %v193
    %v195 = vrot.slane %v181, %v194
    %v196 = vcombine.high %v188, %v188
    %v197 = vcombine.high %v195, %v195
    %v198 = vcombine.high %v178, %v178
    %v200 = vunpack.c.l.s4 1983009808
    %v201 = vunpack.c.0.s8 %v200
    %v202 = vlaneseq
    %v203 = vshrl.u32 %v202, 7
    %v204 = vsub.s32 %v201, %v203
    %v205 = vrot.slane %v178, %v204
    %v207 = vunpack.c.l.s4 1983009808
    %v208 = vunpack.c.0.s8 %v207
    %v209 = vlaneseq
    %v210 = vshrl.u32 %v209, 7
    %v211 = vsub.s32 %v208, %v210
    %v212 = vrot.slane %v198, %v211
    %v213 = vcombine.high %v205, %v205
    %v214 = vcombine.high %v212, %v212
    %v223 = vsel %vm155, %v188, 0.0
    %v224 = vsel %vm155, %v196, 0.0
    %v225 = vadd.f32 %v223, %v224
    %v226 = vsel %vm155, %v195, 0.0
    %v227 = vadd.f32 %v225, %v226
    %v228 = vsel %vm155, %v197, 0.0
    %v229 = vadd.f32 %v227, %v228
    %v230 = vsel %vm155, %v205, 0.0
    %v231 = vadd.f32 %v229, %v230
    %v232 = vsel %vm155, %v213, 0.0
    %v233 = vadd.f32 %v231, %v232
    %v234 = vsel %vm155, %v212, 0.0
    %v235 = vadd.f32 %v233, %v234
    %v236 = vsel %vm155, %v214, 0.0
    %v237 = vadd.f32 %v235, %v236
    %238 = vadd.xlane.f32.xlu0 %v237
    %v239 = vpop.xlane.xlu0 %238
    %v240 = vadd.f32 %v176, %v239
    %241 = vst.msk [vmem:[%s3] sm:$0x3] %vm174, %v240
    %v242 = vld [vmem:[%s4] sm:$0x3]
    %v245 = vcombine.high %v108, %v108
    %v247 = vunpack.c.l.s4 1983009808
    %v248 = vunpack.c.0.s8 %v247
    %v249 = vlaneseq
    %v250 = vshrl.u32 %v249, 7
    %v251 = vsub.s32 %v248, %v250
    %v252 = vrot.slane %v108, %v251
    %v254 = vunpack.c.l.s4 1983009808
    %v255 = vunpack.c.0.s8 %v254
    %v256 = vlaneseq
    %v257 = vshrl.u32 %v256, 7
    %v258 = vsub.s32 %v255, %v257
    %v259 = vrot.slane %v245, %v258
    %v260 = vcombine.high %v252, %v252
    %v261 = vcombine.high %v259, %v259
    %v262 = vcombine.high %v109, %v109
    %v264 = vunpack.c.l.s4 1983009808
    %v265 = vunpack.c.0.s8 %v264
    %v266 = vlaneseq
    %v267 = vshrl.u32 %v266, 7
    %v268 = vsub.s32 %v265, %v267
    %v269 = vrot.slane %v109, %v268
    %v271 = vunpack.c.l.s4 1983009808
    %v272 = vunpack.c.0.s8 %v271
    %v273 = vlaneseq
    %v274 = vshrl.u32 %v273, 7
    %v275 = vsub.s32 %v272, %v274
    %v276 = vrot.slane %v262, %v275
    %v277 = vcombine.high %v269, %v269
    %v278 = vcombine.high %v276, %v276
    %v287 = vsel %vm155, %v252, 0.0
    %v288 = vsel %vm155, %v260, 0.0
    %v289 = vadd.f32 %v287, %v288
    %v290 = vsel %vm155, %v259, 0.0
    %v291 = vadd.f32 %v289, %v290
    %v292 = vsel %vm155, %v261, 0.0
    %v293 = vadd.f32 %v291, %v292
    %v294 = vsel %vm155, %v269, 0.0
    %v295 = vadd.f32 %v293, %v294
    %v296 = vsel %vm155, %v277, 0.0
    %v297 = vadd.f32 %v295, %v296
    %v298 = vsel %vm155, %v276, 0.0
    %v299 = vadd.f32 %v297, %v298
    %v300 = vsel %vm155, %v278, 0.0
    %v301 = vadd.f32 %v299, %v300
    %302 = vadd.xlane.f32.xlu0 %v301
    %v303 = vpop.xlane.xlu0 %302
    %v304 = vadd.f32 %v242, %v303
    %305 = vst.msk [vmem:[%s4] sm:$0x3] %vm174, %v304
    %v306 = vld [vmem:[%s5] sm:$0x3]
    %v309 = vcombine.high %v62, %v62
    %v311 = vunpack.c.l.s4 1983009808
    %v312 = vunpack.c.0.s8 %v311
    %v313 = vlaneseq
    %v314 = vshrl.u32 %v313, 7
    %v315 = vsub.s32 %v312, %v314
    %v316 = vrot.slane %v62, %v315
    %v318 = vunpack.c.l.s4 1983009808
    %v319 = vunpack.c.0.s8 %v318
    %v320 = vlaneseq
    %v321 = vshrl.u32 %v320, 7
    %v322 = vsub.s32 %v319, %v321
    %v323 = vrot.slane %v309, %v322
    %v324 = vcombine.high %v316, %v316
    %v325 = vcombine.high %v323, %v323
    %v326 = vcombine.high %v63, %v63
    %v328 = vunpack.c.l.s4 1983009808
    %v329 = vunpack.c.0.s8 %v328
    %v330 = vlaneseq
    %v331 = vshrl.u32 %v330, 7
    %v332 = vsub.s32 %v329, %v331
    %v333 = vrot.slane %v63, %v332
    %v335 = vunpack.c.l.s4 1983009808
    %v336 = vunpack.c.0.s8 %v335
    %v337 = vlaneseq
    %v338 = vshrl.u32 %v337, 7
    %v339 = vsub.s32 %v336, %v338
    %v340 = vrot.slane %v326, %v339
    %v341 = vcombine.high %v333, %v333
    %v342 = vcombine.high %v340, %v340
    %v351 = vsel %vm155, %v316, 0.0
    %v352 = vsel %vm155, %v324, 0.0
    %v353 = vadd.f32 %v351, %v352
    %v354 = vsel %vm155, %v323, 0.0
    %v355 = vadd.f32 %v353, %v354
    %v356 = vsel %vm155, %v325, 0.0
    %v357 = vadd.f32 %v355, %v356
    %v358 = vsel %vm155, %v333, 0.0
    %v359 = vadd.f32 %v357, %v358
    %v360 = vsel %vm155, %v341, 0.0
    %v361 = vadd.f32 %v359, %v360
    %v362 = vsel %vm155, %v340, 0.0
    %v363 = vadd.f32 %v361, %v362
    %v364 = vsel %vm155, %v342, 0.0
    %v365 = vadd.f32 %v363, %v364
    %366 = vadd.xlane.f32.xlu0 %v365
    %v367 = vpop.xlane.xlu0 %366
    %v368 = vadd.f32 %v306, %v367
    %369 = vst.msk [vmem:[%s5] sm:$0x3] %vm174, %v368
    // Predicated region
    $region22: #{tpu_custom_call.1} parent=1 // pred_check
      _
    $region23: #{tpu_custom_call.1} parent=1 // pred_check_branch
      %371 = sbr.rel (0) target = $region25
    $region24: #{tpu_custom_call.1} parent=1 // pred_region
      _
    $region25: #{tpu_custom_call.1} parent=1 // pred_fallthru
      _
    // Predicated region
    $region26: #{tpu_custom_call.1} parent=1 // pred_check
      _
    $region27: #{tpu_custom_call.1} parent=1 // pred_check_branch
      %373 = sbr.rel (0) target = $region29
    $region28: #{tpu_custom_call.1} parent=1 // pred_region
      _
    $region29: #{tpu_custom_call.1} parent=1 // pred_fallthru
      _
    // Predicated region
    $region30: #{tpu_custom_call.1} parent=1 // pred_check
      _
    $region31: #{tpu_custom_call.1} parent=1 // pred_check_branch
      %375 = sbr.rel (0) target = $region33
    $region32: #{tpu_custom_call.1} parent=1 // pred_region
      _
    $region33: #{tpu_custom_call.1} parent=1 // pred_fallthru
      _
    // Predicated region
    $region34: #{tpu_custom_call.1} parent=1 // pred_check
      _
    $region35: #{tpu_custom_call.1} parent=1 // pred_check_branch
      %377 = sbr.rel (0) target = $region37
    $region36: #{tpu_custom_call.1} parent=1 // pred_region
      _
    $region37: #{tpu_custom_call.1} parent=1 // pred_fallthru
      _
    // Predicated region
    $region38: #{tpu_custom_call.1} parent=1 // pred_check
      _
    $region39: #{tpu_custom_call.1} parent=1 // pred_check_branch
      %379 = sbr.rel (0) target = $region41
    $region40: #{tpu_custom_call.1} parent=1 // pred_region
      _
    $region41: #{tpu_custom_call.1} parent=1 // pred_fallthru
      _
    // Predicated region
    $region42: #{tpu_custom_call.1} parent=1 // pred_check
      _
    $region43: #{tpu_custom_call.1} parent=1 // pred_check_branch
      %381 = sbr.rel (0) target = $region45
    $region44: #{tpu_custom_call.1} parent=1 // pred_region
      _
    $region45: #{tpu_custom_call.1} parent=1 // pred_fallthru
      _
    // Predicated region
    $region46: #{tpu_custom_call.1} parent=1 // pred_check
      _
    $region47: #{tpu_custom_call.1} parent=1 // pred_check_branch
      %383 = sbr.rel (0) target = $region49
    $region48: #{tpu_custom_call.1} parent=1 // pred_region
      _
    $region49: #{tpu_custom_call.1} parent=1 // pred_fallthru
      _
    // Predicated region
    $region50: #{tpu_custom_call.1} parent=1 // pred_check
      _
    $region51: #{tpu_custom_call.1} parent=1 // pred_check_branch
      %385 = sbr.rel (0) target = $region53
    $region52: #{tpu_custom_call.1} parent=1 // pred_region
      _
    $region53: #{tpu_custom_call.1} parent=1 // pred_fallthru
      _
    %386 = vsyncpa [#allocation3], 1
    %387 = vsyncpa [#allocation5], 1

</llo_original>
